<compile_context>
chip_gen: v7x
topology: tpu7x:2x2x1
jax: 0.10.0
libtpu: 0.0.40
codegen_flags: <defaults>
</compile_context>

<pallas_src>
import jax
import jax.numpy as jnp
import numpy as np
from jax.experimental import pallas as pl
from jax.experimental.pallas import tpu as pltpu

VERTICAL, HORIZONTAL = 0, 1   # Direction enum of tansacnet
_LANE = 128                   # minimum lane granularity
_MAX_L_TILE = 32768           # cap on lanes per grid step (raised per perf review)
_NB_MAX = 8                   # max batch samples folded into one grid step
_VMEM_BUDGET = 20 * 1024 * 1024   # double-buffered working-set target (< 32 MiB scoped)


def _round_up(x, m):
    return ((x + m - 1) // m) * m


# ----------------------------------------------------------------------------
# Parameter / constant construction (plain JAX / numpy glue)
# ----------------------------------------------------------------------------
def _dct_matrix(m):
    """Orthonormal DCT-II matrix C (m x m): y = C @ x."""
    n = np.arange(m)[None, :]
    k = np.arange(m)[:, None]
    C = np.sqrt(2.0 / m) * np.cos(np.pi * (2 * n + 1) * k / (2 * m))
    C[0, :] *= 1.0 / np.sqrt(2.0)
    return C


def _e0_matrix(stride):
    """nDecs x nDecs matrix: row-major vectorized block -> (cee,coo,coe,ceo) DCT coefs."""
    sv, sh = stride
    K = np.kron(_dct_matrix(sv), _dct_matrix(sh))  # vec(Cv B Ch^T) = (Cv ⊗ Ch) vec(B)
    perm = []
    for kv in range(0, sv, 2):
        for kh in range(0, sh, 2):
            perm.append(kv * sh + kh)      # cee
    for kv in range(1, sv, 2):
        for kh in range(1, sh, 2):
            perm.append(kv * sh + kh)      # coo
    for kv in range(1, sv, 2):
        for kh in range(0, sh, 2):
            perm.append(kv * sh + kh)      # coe
    for kv in range(0, sv, 2):
        for kh in range(1, sh, 2):
            perm.append(kv * sh + kh)      # ceo
    return jnp.asarray(K[perm, :], dtype=jnp.float32)


def _orthonormal_matrices(angles, mus):
    """Per-block orthonormal matrices from Givens angles (lexicographic (p,q) order)
    and sign vector mus (OrthonormalTransform convention)."""
    # TODO(synk): verified exact against tansacnet's OrthonormalTransform for n<=2
    # (stride (2,2)); for larger strides the Givens ordering/sign convention of
    # this parameter-construction glue must be re-checked.
    nblks, n = mus.shape
    mats = jnp.tile(jnp.eye(n, dtype=jnp.float32)[None], (nblks, 1, 1))
    idx = 0
    for p in range(n - 1):
        for q in range(p + 1, n):
            a = angles[:, idx]
            c = jnp.cos(a)[:, None]
            s = jnp.sin(a)[:, None]
            rp = c * mats[:, p, :] - s * mats[:, q, :]
            rq = s * mats[:, p, :] + c * mats[:, q, :]
            mats = mats.at[:, p, :].set(rp)
            mats = mats.at[:, q, :].set(rq)
            idx += 1
    return mus[:, :, None] * mats


# ----------------------------------------------------------------------------
# Pallas kernel: fused (DCT ∘ per-block rotation) as a per-block matvec
# ----------------------------------------------------------------------------
def _lsun_stage_kernel(x_ref, v_ref, y_ref):
    # x_ref: (Nb, D, Lt) row-major vectorized (sv x sh) pixel blocks
    # v_ref: (D, D, Lt)  folded per-block matrices, v_ref[j, i, l] = (V_l @ E0)[i, j]
    # y_ref: (Nb, D, Lt)
    Nb, D, _ = x_ref.shape
    for nb in range(Nb):                               # static unroll over batch block
        x = x_ref[nb]                                  # (D, Lt) single load
        # y[i, l] = sum_j v[j, i, l] * x[j, l] : D full-width (D, Lt) VPU FMAs,
        # x row broadcast across sublanes (kernel is memory-bound; VPU is filler).
        parts = [v_ref[j] * x[j:j + 1, :] for j in range(D)]
        while len(parts) > 1:                          # pairwise tree (short dep chain)
            nxt = [parts[k] + parts[k + 1] for k in range(0, len(parts) - 1, 2)]
            if len(parts) % 2:
                nxt.append(parts[-1])
            parts = nxt
        y_ref[nb] = parts[0]                           # one lane-dense store per sample


def _lsun_stage(xb, v3d, lt, nb):
    N, D, Lp = xb.shape
    assert Lp % lt == 0 and N % nb == 0
    # Grid: spatial tiles outer (megacore-split axis), batch blocks inner.
    # V's index_map ignores the batch axis, so its tile is revisited (DMA skipped)
    # across consecutive batch steps.
    grid = (Lp // lt, N // nb)
    return pl.pallas_call(
        _lsun_stage_kernel,
        out_shape=jax.ShapeDtypeStruct((N, D, Lp), jnp.float32),
        grid_spec=pltpu.PrefetchScalarGridSpec(
            num_scalar_prefetch=0,
            grid=grid,
            in_specs=[
                pl.BlockSpec((nb, D, lt), lambda i, n: (n, 0, i)),
                pl.BlockSpec((D, D, lt), lambda i, n: (0, 0, i)),
            ],
            out_specs=pl.BlockSpec((nb, D, lt), lambda i, n: (n, 0, i)),
        ),
        compiler_params=pltpu.CompilerParams(
            # "arbitrary" on the batch axis: never let the v7x megacore shard the
            # batch (it would duplicate the dominant V' HBM stream per core).
            dimension_semantics=("parallel", "arbitrary"),
            vmem_limit_bytes=32 * 1024 * 1024,
        ),
    )(xb, v3d)


# ----------------------------------------------------------------------------
# Network wrapper
# ----------------------------------------------------------------------------
class LsunAnalysis2dNetworkPallas:
    def __init__(self, input_size=(16, 16), stride=(2, 2),
                 overlapping_factor=(1, 1), no_dc_leakage=True,
                 number_of_levels=0, key=None):
        stride = tuple(stride)
        input_size = tuple(input_size)
        nDecs = stride[VERTICAL] * stride[HORIZONTAL]
        if nDecs % 2 != 0:
            raise ValueError("even product of strides only")
        if (overlapping_factor[VERTICAL] - 1) % 2 or (overlapping_factor[HORIZONTAL] - 1) % 2:
            raise ValueError("odd overlapping factors only")
        if input_size[VERTICAL] % stride[VERTICAL] or input_size[HORIZONTAL] % stride[HORIZONTAL]:
            raise ValueError("input size must be a multiple of the stride")
        if tuple(overlapping_factor) != (1, 1) or number_of_levels != 0:
            # TODO(synk): atom-extension (Qh/Qv) + intermediate rotations and the
            # multi-level channel-separation path are not built for non-default configs.
            raise NotImplementedError("only overlapping_factor=(1,1), number_of_levels=0")

        self.stride = stride
        self.nDecs = nDecs
        self.nrows = input_size[VERTICAL] // stride[VERTICAL]
        self.ncols = input_size[HORIZONTAL] // stride[HORIZONTAL]
        D = nDecs
        ps = (D + 1) // 2
        pa = D // 2
        self.ps, self.pa = ps, pa

        self.E0 = _e0_matrix(stride)                      # (D, D) shared DCT / reorder

        nblks = self.nrows * self.ncols
        if key is None:
            key = jax.random.PRNGKey(0)
        kW, kU = jax.random.split(key)
        nAngW = ps * (ps - 1) // 2
        nAngU = pa * (pa - 1) // 2
        # Deterministic synthetic angle parameters (module default is zeros).
        angW = 0.5 * jax.random.normal(kW, (nblks, nAngW), jnp.float32)
        angU = 0.5 * jax.random.normal(kU, (nblks, nAngU), jnp.float32)
        musW = jnp.ones((nblks, ps), jnp.float32)         # mus=1 in initial layer
        musU = jnp.ones((nblks, pa), jnp.float32)
        if no_dc_leakage:                                 # force first row of W0 = e1
            if ps > 1:
                angW = angW.at[:, :ps - 1].set(0.0)
            musW = musW.at[:, 0].set(1.0)
        W0 = _orthonormal_matrices(angW, musW)            # (nblks, ps, ps)
        U0 = _orthonormal_matrices(angU, musU)            # (nblks, pa, pa)
        V = jnp.zeros((nblks, D, D), jnp.float32)
        V = V.at[:, :ps, :ps].set(W0).at[:, ps:, ps:].set(U0)
        self.V = V                                        # (nblks, D, D)

        # --- fold the shared DCT into the per-block rotation (host-side, exact f32) ---
        Vp = jnp.einsum('bij,jk->bik', V, self.E0,
                        precision=jax.lax.Precision.HIGHEST)   # (nblks, D, D)
        # Kernel layout: v3d[j, i, l] = Vp[l, i, j]
        v3d = jnp.transpose(Vp, (2, 1, 0))                     # (D, D, nblks)

        # --- lane tiling sized from the double-buffered VMEM working set ---
        # Buffers per lane (f32, double-buffered, sublane-padded D -> Dp):
        #   V: D*Dp, x: Nb*Dp, y: Nb*Dp   (conservatively with Nb = _NB_MAX)
        Dp = _round_up(D, 8)
        bytes_per_lane = 4 * 2 * (D * Dp + 2 * _NB_MAX * Dp)
        lane_cap = max(_LANE,
                       min(_MAX_L_TILE,
                           (_VMEM_BUDGET // bytes_per_lane) // _LANE * _LANE))
        Lsp = nblks
        Lp = _round_up(Lsp, _LANE)
        if Lp <= lane_cap:
            lt = Lp
        else:
            lt = lane_cap
            Lp = _round_up(Lsp, lt)
        self.Lsp, self.Lp, self.lt = Lsp, Lp, lt
        # Zero-padded lanes of V' yield zero outputs that are sliced off.
        self.v3d = jnp.pad(v3d, ((0, 0), (0, 0), (0, Lp - Lsp)))

    def __call__(self, x):
        # x: (N, 1, H, W) NCHW
        N, C, H, W = x.shape
        assert C == 1, "number_of_components=1 only"
        sv, sh = self.stride
        nrows, ncols, D = self.nrows, self.ncols, self.nDecs
        Lsp, Lp, lt = self.Lsp, self.Lp, self.lt

        # Batch block: largest divisor of N that is <= _NB_MAX (no batch padding,
        # so zero-lane-padding is the only padding the kernel ever sees).
        nb = 1
        for d in range(min(_NB_MAX, N), 0, -1):
            if N % d == 0:
                nb = d
                break

        # TODO(synk): the blockize transpose and the final output transpose remain
        # wrapper-side XLA copies; moving the (sv,sh) even/odd deinterleave into the
        # kernel would remove two extra full HBM passes for very large inputs.
        xb = (x[:, 0].astype(jnp.float32)
              .reshape(N, nrows, sv, ncols, sh)
              .transpose(0, 2, 4, 1, 3)                    # (N, sv, sh, nrows, ncols)
              .reshape(N, D, Lsp))                         # D = v*sh + h, L = r*ncols + c
        if Lp != Lsp:
            xb = jnp.pad(xb, ((0, 0), (0, 0), (0, Lp - Lsp)))

        y = _lsun_stage(xb, self.v3d, lt, nb)[:, :, :Lsp]  # (N, D, Lsp)
        return y.transpose(0, 2, 1).reshape(N, nrows, ncols, D)


# ----------------------------------------------------------------------------
# Pure-JAX reference (mirrors the PyTorch forward semantics: E0 then V0)
# ----------------------------------------------------------------------------
def reference_forward(net, x):
    N, _, H, W = x.shape
    sv, sh = net.stride
    nrows, ncols, D = net.nrows, net.ncols, net.nDecs
    xb = (x[:, 0].astype(jnp.float32)
          .reshape(N, nrows, sv, ncols, sh)
          .transpose(0, 1, 3, 2, 4).reshape(N, nrows, ncols, D))
    hp = jax.lax.Precision.HIGHEST
    coeffs = jnp.einsum('ij,nrcj->nrci', net.E0, xb, precision=hp)
    V = net.V.reshape(nrows, ncols, D, D)
    return jnp.einsum('rcij,nrcj->nrci', V, coeffs, precision=hp)


if __name__ == "__main__":
    key = jax.random.PRNGKey(0)
    kx, kp, kx2, kp2 = jax.random.split(key, 4)

    # --- primary test: module-default-like small shape -----------------------
    N, C, H, W = 2, 1, 16, 16
    x = jax.random.normal(kx, (N, C, H, W), dtype=jnp.float32)
    net = LsunAnalysis2dNetworkPallas(input_size=(H, W), stride=(2, 2),
                                      overlapping_factor=(1, 1),
                                      no_dc_leakage=True,
                                      number_of_levels=0, key=kp)
    y = jax.block_until_ready(net(x))
    assert y.shape == (N, H // 2, W // 2, 4)
    y_ref = reference_forward(net, x)
    if not jnp.allclose(y, y_ref, atol=1e-4, rtol=1e-4):
        raise AssertionError("Pallas kernel output mismatch vs reference (test 1)")

    # --- secondary test: exercises batch blocking + grid batch iteration -----
    N2, H2, W2 = 10, 1, 32        # nb = 5 -> two batch grid steps, V revisit path
    x2 = jax.random.normal(kx2, (N2, 1, 32, 32), dtype=jnp.float32)
    net2 = LsunAnalysis2dNetworkPallas(input_size=(32, 32), stride=(2, 2),
                                       overlapping_factor=(1, 1),
                                       no_dc_leakage=True,
                                       number_of_levels=0, key=kp2)
    y2 = jax.block_until_ready(net2(x2))
    assert y2.shape == (N2, 16, 16, 4)
    y2_ref = reference_forward(net2, x2)
    if not jnp.allclose(y2, y2_ref, atol=1e-4, rtol=1e-4):
        raise AssertionError("Pallas kernel output mismatch vs reference (test 2)")

    print("KERNEL_OK")
</pallas_src>

<mosaic_0001>
module attributes {stable_mosaic.version = 11 : i64} {
  func.func @_lsun_stage_kernel(%arg0: i32, %arg1: i32, %arg2: memref<2x4x128xf32, #tpu.memory_space<vmem>>, %arg3: memref<4x4x128xf32, #tpu.memory_space<vmem>>, %arg4: memref<2x4x128xf32, #tpu.memory_space<vmem>>) attributes {dimension_semantics = [#tpu.dimension_semantics<parallel>, #tpu.dimension_semantics<arbitrary>], iteration_bounds = array<i64: 1, 1>, scalar_prefetch = 0 : i64, scratch_operands = 0 : i64, tpu.core_type = #tpu.core_type<tc>, window_params = [{transform_indices = @transform_0, window_bounds = array<i64: 2, 4, 128>}, {transform_indices = @transform_1, window_bounds = array<i64: 4, 4, 128>}, {transform_indices = @transform_2, window_bounds = array<i64: 2, 4, 128>}]} {
    %c0 = arith.constant 0 : index
    %c0_0 = arith.constant 0 : index
    %c0_1 = arith.constant 0 : index
    %0 = vector.load %arg2[%c0, %c0_0, %c0_1] : memref<2x4x128xf32, #tpu.memory_space<vmem>>, vector<1x4x128xf32>
    %1 = vector.shape_cast %0 : vector<1x4x128xf32> to vector<4x128xf32>
    %c0_2 = arith.constant 0 : index
    %c0_3 = arith.constant 0 : index
    %c0_4 = arith.constant 0 : index
    %2 = vector.load %arg3[%c0_2, %c0_3, %c0_4] : memref<4x4x128xf32, #tpu.memory_space<vmem>>, vector<1x4x128xf32>
    %3 = vector.shape_cast %2 : vector<1x4x128xf32> to vector<4x128xf32>
    %4 = vector.extract_strided_slice %1 {offsets = [0, 0], sizes = [1, 128], strides = [1, 1]} : vector<4x128xf32> to vector<1x128xf32>
    %5 = vector.broadcast %4 : vector<1x128xf32> to vector<4x128xf32>
    %6 = arith.mulf %3, %5 : vector<4x128xf32>
    %c1 = arith.constant 1 : index
    %c0_5 = arith.constant 0 : index
    %c0_6 = arith.constant 0 : index
    %7 = vector.load %arg3[%c1, %c0_5, %c0_6] : memref<4x4x128xf32, #tpu.memory_space<vmem>>, vector<1x4x128xf32>
    %8 = vector.shape_cast %7 : vector<1x4x128xf32> to vector<4x128xf32>
    %9 = vector.extract_strided_slice %1 {offsets = [1, 0], sizes = [1, 128], strides = [1, 1]} : vector<4x128xf32> to vector<1x128xf32>
    %10 = vector.broadcast %9 : vector<1x128xf32> to vector<4x128xf32>
    %11 = arith.mulf %8, %10 : vector<4x128xf32>
    %c2 = arith.constant 2 : index
    %c0_7 = arith.constant 0 : index
    %c0_8 = arith.constant 0 : index
    %12 = vector.load %arg3[%c2, %c0_7, %c0_8] : memref<4x4x128xf32, #tpu.memory_space<vmem>>, vector<1x4x128xf32>
    %13 = vector.shape_cast %12 : vector<1x4x128xf32> to vector<4x128xf32>
    %14 = vector.extract_strided_slice %1 {offsets = [2, 0], sizes = [1, 128], strides = [1, 1]} : vector<4x128xf32> to vector<1x128xf32>
    %15 = vector.broadcast %14 : vector<1x128xf32> to vector<4x128xf32>
    %16 = arith.mulf %13, %15 : vector<4x128xf32>
    %c3 = arith.constant 3 : index
    %c0_9 = arith.constant 0 : index
    %c0_10 = arith.constant 0 : index
    %17 = vector.load %arg3[%c3, %c0_9, %c0_10] : memref<4x4x128xf32, #tpu.memory_space<vmem>>, vector<1x4x128xf32>
    %18 = vector.shape_cast %17 : vector<1x4x128xf32> to vector<4x128xf32>
    %19 = vector.extract_strided_slice %1 {offsets = [3, 0], sizes = [1, 128], strides = [1, 1]} : vector<4x128xf32> to vector<1x128xf32>
    %20 = vector.broadcast %19 : vector<1x128xf32> to vector<4x128xf32>
    %21 = arith.mulf %18, %20 : vector<4x128xf32>
    %22 = arith.addf %6, %11 : vector<4x128xf32>
    %23 = arith.addf %16, %21 : vector<4x128xf32>
    %24 = arith.addf %22, %23 : vector<4x128xf32>
    %c0_11 = arith.constant 0 : index
    %c0_12 = arith.constant 0 : index
    %c0_13 = arith.constant 0 : index
    %25 = vector.load %arg4[%c0_11, %c0_12, %c0_13] : memref<2x4x128xf32, #tpu.memory_space<vmem>>, vector<1x4x128xf32>
    %26 = vector.shape_cast %25 : vector<1x4x128xf32> to vector<4x128xf32>
    %27 = vector.shape_cast %24 : vector<4x128xf32> to vector<1x4x128xf32>
    tpu.vector_store %arg4[%c0_11, %c0_12, %c0_13], %27 {strides = array<i32>} : memref<2x4x128xf32, #tpu.memory_space<vmem>>, vector<1x4x128xf32>,
    %c1_14 = arith.constant 1 : index
    %c0_15 = arith.constant 0 : index
    %c0_16 = arith.constant 0 : index
    %28 = vector.load %arg2[%c1_14, %c0_15, %c0_16] : memref<2x4x128xf32, #tpu.memory_space<vmem>>, vector<1x4x128xf32>
    %29 = vector.shape_cast %28 : vector<1x4x128xf32> to vector<4x128xf32>
    %c0_17 = arith.constant 0 : index
    %c0_18 = arith.constant 0 : index
    %c0_19 = arith.constant 0 : index
    %30 = vector.load %arg3[%c0_17, %c0_18, %c0_19] : memref<4x4x128xf32, #tpu.memory_space<vmem>>, vector<1x4x128xf32>
    %31 = vector.shape_cast %30 : vector<1x4x128xf32> to vector<4x128xf32>
    %32 = vector.extract_strided_slice %29 {offsets = [0, 0], sizes = [1, 128], strides = [1, 1]} : vector<4x128xf32> to vector<1x128xf32>
    %33 = vector.broadcast %32 : vector<1x128xf32> to vector<4x128xf32>
    %34 = arith.mulf %31, %33 : vector<4x128xf32>
    %c1_20 = arith.constant 1 : index
    %c0_21 = arith.constant 0 : index
    %c0_22 = arith.constant 0 : index
    %35 = vector.load %arg3[%c1_20, %c0_21, %c0_22] : memref<4x4x128xf32, #tpu.memory_space<vmem>>, vector<1x4x128xf32>
    %36 = vector.shape_cast %35 : vector<1x4x128xf32> to vector<4x128xf32>
    %37 = vector.extract_strided_slice %29 {offsets = [1, 0], sizes = [1, 128], strides = [1, 1]} : vector<4x128xf32> to vector<1x128xf32>
    %38 = vector.broadcast %37 : vector<1x128xf32> to vector<4x128xf32>
    %39 = arith.mulf %36, %38 : vector<4x128xf32>
    %c2_23 = arith.constant 2 : index
    %c0_24 = arith.constant 0 : index
    %c0_25 = arith.constant 0 : index
    %40 = vector.load %arg3[%c2_23, %c0_24, %c0_25] : memref<4x4x128xf32, #tpu.memory_space<vmem>>, vector<1x4x128xf32>
    %41 = vector.shape_cast %40 : vector<1x4x128xf32> to vector<4x128xf32>
    %42 = vector.extract_strided_slice %29 {offsets = [2, 0], sizes = [1, 128], strides = [1, 1]} : vector<4x128xf32> to vector<1x128xf32>
    %43 = vector.broadcast %42 : vector<1x128xf32> to vector<4x128xf32>
    %44 = arith.mulf %41, %43 : vector<4x128xf32>
    %c3_26 = arith.constant 3 : index
    %c0_27 = arith.constant 0 : index
    %c0_28 = arith.constant 0 : index
    %45 = vector.load %arg3[%c3_26, %c0_27, %c0_28] : memref<4x4x128xf32, #tpu.memory_space<vmem>>, vector<1x4x128xf32>
    %46 = vector.shape_cast %45 : vector<1x4x128xf32> to vector<4x128xf32>
    %47 = vector.extract_strided_slice %29 {offsets = [3, 0], sizes = [1, 128], strides = [1, 1]} : vector<4x128xf32> to vector<1x128xf32>
    %48 = vector.broadcast %47 : vector<1x128xf32> to vector<4x128xf32>
    %49 = arith.mulf %46, %48 : vector<4x128xf32>
    %50 = arith.addf %34, %39 : vector<4x128xf32>
    %51 = arith.addf %44, %49 : vector<4x128xf32>
    %52 = arith.addf %50, %51 : vector<4x128xf32>
    %c1_29 = arith.constant 1 : index
    %c0_30 = arith.constant 0 : index
    %c0_31 = arith.constant 0 : index
    %53 = vector.load %arg4[%c1_29, %c0_30, %c0_31] : memref<2x4x128xf32, #tpu.memory_space<vmem>>, vector<1x4x128xf32>
    %54 = vector.shape_cast %53 : vector<1x4x128xf32> to vector<4x128xf32>
    %55 = vector.shape_cast %52 : vector<4x128xf32> to vector<1x4x128xf32>
    tpu.vector_store %arg4[%c1_29, %c0_30, %c0_31], %55 {strides = array<i32>} : memref<2x4x128xf32, #tpu.memory_space<vmem>>, vector<1x4x128xf32>,
    return
  }
  func.func @transform_0(%arg0: i32, %arg1: i32) -> (i32, i32, i32) {
    %c0_i32 = arith.constant 0 : i32
    %c0_i32_0 = arith.constant 0 : i32
    return %arg1, %c0_i32, %arg0 : i32, i32, i32
  }
  func.func @transform_1(%arg0: i32, %arg1: i32) -> (i32, i32, i32) {
    %c0_i32 = arith.constant 0 : i32
    %c0_i32_0 = arith.constant 0 : i32
    %c0_i32_1 = arith.constant 0 : i32
    return %c0_i32, %c0_i32_0, %arg0 : i32, i32, i32
  }
  func.func @transform_2(%arg0: i32, %arg1: i32) -> (i32, i32, i32) {
    %c0_i32 = arith.constant 0 : i32
    %c0_i32_0 = arith.constant 0 : i32
    return %arg1, %c0_i32, %arg0 : i32, i32, i32
  }
}

</mosaic_0001>

<llo_original>
// kernel: tpu_custom_call.1
$region0: #{tpu_custom_call.1}
  #allocation0 [shape = 'u32[]', space=smem, size = 0x4, offset = 0x4, fixed_abs, tag = 'smem constant byte address 0x4 - core index']
  #allocation1 [shape = 'u32[144,128]{1,0:T(1,128)}', space=vmem, size = 0x12000, scoped, tag = 'internal scratch']
  %s0 = inlined_call_operand.hbm [shape: f32[2,4,128], index: 0, kind: input, shape index: {}]
  %s1 = inlined_call_operand.hbm [shape: f32[4,4,128], index: 1, kind: input, shape index: {}]
  %s2 = inlined_call_operand.hbm [shape: f32[2,4,128], index: 2, kind: output, shape index: {}]
  %s3 = sld [smem:[#allocation0]]
  $region26: #{tpu_custom_call.1} parent=0
    _
  %s5 = ssub.s32 1, %s3
  %s6 = scalar_select 0, %s5, %s3
  $region1: #{tpu_custom_call.1} parent=0
    #allocation2 [shape = 'u8[4096]{0}', space=vmem, size = 0x1000, scoped, tag = 'input window, operand 0, single buffered']
    #allocation3 [shape = 's32[1]{0}', space=sflag, size = 0x4, scoped, tag = 'scoped memory for tpu_custom_call.1']
    #allocation4 [shape = 's32[1]{0}', space=sflag, size = 0x4, scoped, tag = 'scoped memory for tpu_custom_call.1']
    #allocation5 [shape = 'u8[8192]{0}', space=vmem, size = 0x2000, scoped, tag = 'input window, operand 1, single buffered']
    #allocation6 [shape = 's32[1]{0}', space=sflag, size = 0x4, scoped, tag = 'scoped memory for tpu_custom_call.1']
    #allocation7 [shape = 'u8[4096]{0}', space=vmem, size = 0x1000, scoped, tag = 'output window, operand 0, single buffered']
    %7 = vsyncpa [#allocation3], 0
    %8 = vsyncpa [#allocation6], 0
    %9 = vsyncpa [#allocation4], 0
    // Predicated region
    $region2: #{tpu_custom_call.1} parent=1 // pred_check
      _
    $region3: #{tpu_custom_call.1} parent=1 // pred_check_branch
      %11 = sbr.rel (0) target = $region5
    $region4: #{tpu_custom_call.1} parent=1 // pred_region
      %s13 = ssub.s32 128, 128
      %14 = vsyncadd [#allocation3], %s13
      %s15 = sshll.u32 [#allocation2], 4
      %s16 = int_to_ptr.vmem [resolvable:$true] %s15
      %21 = dma.hbm_to_vmem [thread:$0]  %s0, 128, %s16, [#allocation3], 64, 64, 4
    $region5: #{tpu_custom_call.1} parent=1 // pred_fallthru
      _
    // Predicated region
    $region6: #{tpu_custom_call.1} parent=1 // pred_check
      _
    $region7: #{tpu_custom_call.1} parent=1 // pred_check_branch
      %23 = sbr.rel (0) target = $region9
    $region8: #{tpu_custom_call.1} parent=1 // pred_region
      %s25 = ssub.s32 256, 256
      %26 = vsyncadd [#allocation6], %s25
      %s27 = sshll.u32 [#allocation5], 4
      %s28 = int_to_ptr.vmem [resolvable:$true] %s27
      %33 = dma.hbm_to_vmem [thread:$0]  %s1, 256, %s28, [#allocation6], 64, 64, 4
    $region9: #{tpu_custom_call.1} parent=1 // pred_fallthru
      _
    // Predicated region
    $region10: #{tpu_custom_call.1} parent=1 // pred_check
      _
    $region11: #{tpu_custom_call.1} parent=1 // pred_check_branch
      %35 = sbr.rel (0) target = $region13
    $region12: #{tpu_custom_call.1} parent=1 // pred_region
      %36 = dma.done [#allocation3], 128
    $region13: #{tpu_custom_call.1} parent=1 // pred_fallthru
      _
    // Predicated region
    $region14: #{tpu_custom_call.1} parent=1 // pred_check
      _
    $region15: #{tpu_custom_call.1} parent=1 // pred_check_branch
      %38 = sbr.rel (0) target = $region17
    $region16: #{tpu_custom_call.1} parent=1 // pred_region
      %39 = dma.done [#allocation6], 256
    $region17: #{tpu_custom_call.1} parent=1 // pred_fallthru
      _
    %v40 = vld [vmem:[#allocation2] sm:$0xf]
    %v41 = vld [vmem:[#allocation5] sm:$0xf]
    %v42 = vlaneseq
    %v43 = vshrl.u32 %v42, 7
    %v44 = vsub.s32 0, %v43
    %v45 = vrot.slane %v40, %v44
    %v46 = vmul.f32 %v41, %v45
    %s47 = scalar_lea.vmem [#allocation5], 4
    %v48 = vld [vmem:[%s47] sm:$0xf]
    %v49 = vlaneseq
    %v50 = vshrl.u32 %v49, 7
    %v51 = vsub.s32 1, %v50
    %v52 = vrot.slane %v40, %v51
    %v53 = vmul.f32 %v48, %v52
    %s54 = scalar_lea.vmem [#allocation5], 8
    %v55 = vld [vmem:[%s54] sm:$0xf]
    %v56 = vlaneseq
    %v57 = vshrl.u32 %v56, 7
    %v58 = vsub.s32 2, %v57
    %v59 = vrot.slane %v40, %v58
    %v60 = vmul.f32 %v55, %v59
    %s61 = scalar_lea.vmem [#allocation5], 12
    %v62 = vld [vmem:[%s61] sm:$0xf]
    %v63 = vlaneseq
    %v64 = vshrl.u32 %v63, 7
    %v65 = vsub.s32 3, %v64
    %v66 = vrot.slane %v40, %v65
    %v67 = vmul.f32 %v62, %v66
    %v68 = vadd.f32 %v46, %v53
    %v69 = vadd.f32 %v60, %v67
    %v70 = vadd.f32 %v68, %v69
    %71 = vst [vmem:[#allocation7] sm:$0xf] %v70
    %s72 = scalar_lea.vmem [#allocation2], 4
    %v73 = vld [vmem:[%s72] sm:$0xf]
    %v74 = vld [vmem:[#allocation5] sm:$0xf]
    %v75 = vlaneseq
    %v76 = vshrl.u32 %v75, 7
    %v77 = vsub.s32 0, %v76
    %v78 = vrot.slane %v73, %v77
    %v79 = vmul.f32 %v74, %v78
    %v80 = vld [vmem:[%s47] sm:$0xf]
    %v81 = vlaneseq
    %v82 = vshrl.u32 %v81, 7
    %v83 = vsub.s32 1, %v82
    %v84 = vrot.slane %v73, %v83
    %v85 = vmul.f32 %v80, %v84
    %v86 = vld [vmem:[%s54] sm:$0xf]
    %v87 = vlaneseq
    %v88 = vshrl.u32 %v87, 7
    %v89 = vsub.s32 2, %v88
    %v90 = vrot.slane %v73, %v89
    %v91 = vmul.f32 %v86, %v90
    %v92 = vld [vmem:[%s61] sm:$0xf]
    %v93 = vlaneseq
    %v94 = vshrl.u32 %v93, 7
    %v95 = vsub.s32 3, %v94
    %v96 = vrot.slane %v73, %v95
    %v97 = vmul.f32 %v92, %v96
    %v98 = vadd.f32 %v79, %v85
    %v99 = vadd.f32 %v91, %v97
    %v100 = vadd.f32 %v98, %v99
    %s101 = scalar_lea.vmem [#allocation7], 4
    %102 = vst [vmem:[%s101] sm:$0xf] %v100
    // Predicated region
    $region18: #{tpu_custom_call.1} parent=1 // pred_check
      _
    $region19: #{tpu_custom_call.1} parent=1 // pred_check_branch
      %104 = sbr.rel (0) target = $region21
    $region20: #{tpu_custom_call.1} parent=1 // pred_region
      %s106 = ssub.s32 128, 128
      %107 = vsyncadd [#allocation4], %s106
      %s108 = sshll.u32 [#allocation7], 4
      %s109 = int_to_ptr.vmem [resolvable:$true] %s108
      %114 = dma.vmem_to_hbm [thread:$0]  %s109, 128, %s2, [#allocation4], 64, 64, 4
    $region21: #{tpu_custom_call.1} parent=1 // pred_fallthru
      _
    // Predicated region
    $region22: #{tpu_custom_call.1} parent=1 // pred_check
      _
    $region23: #{tpu_custom_call.1} parent=1 // pred_check_branch
      %116 = sbr.rel (0) target = $region25
    $region24: #{tpu_custom_call.1} parent=1 // pred_region
      %117 = dma.done [#allocation4], 128
    $region25: #{tpu_custom_call.1} parent=1 // pred_fallthru
      _
    %118 = vsyncpa [#allocation3], 1
    %119 = vsyncpa [#allocation6], 1
    %120 = vsyncpa [#allocation4], 1

</llo_original>
